<compile_context>
chip_gen: v6e
topology: v6e:2x2x1
jax: 0.10.0
libtpu: 0.0.40
codegen_flags: <defaults>
</compile_context>

<pallas_src>
import functools

import jax
import jax.numpy as jnp
from jax.experimental import pallas as pl
from jax.experimental.pallas import tpu as pltpu

NEG_INF = -1e30


def _tile_loss_kernel(logits_ref, labels_ref, out_ref, *,
                      k: int, label_smoothing: float,
                      tile_n: int, n_rows: int):
    """One row-tile: hard CE, top-k smoothing CE, correct flag -> partial sums."""
    x = logits_ref[...].astype(jnp.float32)            # (TN, Cp)
    lab = labels_ref[...]                               # (TN, 1) int32
    tn, cpad = x.shape

    # (1, C) class iota, broadcast in comparisons (no (TN, C) int32 buffer).
    col = jax.lax.broadcasted_iota(jnp.int32, (1, cpad), 1)

    # Valid-row mask (handles N not a multiple of tile_n).
    row = (pl.program_id(0) * tile_n
           + jax.lax.broadcasted_iota(jnp.int32, (tn, 1), 0))
    valid = (row < n_rows).astype(jnp.float32)           # (TN, 1)

    # log-sum-exp per row.
    m = jnp.max(x, axis=-1, keepdims=True)
    lse = m + jnp.log(jnp.sum(jnp.exp(x - m), axis=-1, keepdims=True))

    # Hard cross-entropy:  lse - logit[label].
    # TODO(synk): no ignore_index handling (out-of-range labels behave like
    # a zero logit at the label position), same as the previous version.
    onehot = col == lab
    logit_at_label = jnp.sum(jnp.where(onehot, x, 0.0), axis=-1, keepdims=True)
    hard_ce = lse - logit_at_label                       # (TN, 1)

    # Argmax (first-occurrence tie-break) -> correctness flag.
    argmax_idx = jnp.min(jnp.where(x == m, col, cpad), axis=-1, keepdims=True)
    correct = (argmax_idx == lab).astype(jnp.float32)    # (TN, 1)

    # Iterative top-k, reusing m / argmax_idx as the first element.
    topk_sum = m
    work = jnp.where(col == argmax_idx, NEG_INF, x)
    for i in range(k - 1):
        cur = jnp.max(work, axis=-1, keepdims=True)
        topk_sum = topk_sum + cur
        if i < k - 2:   # no need to mask after the last pick
            first = jnp.min(jnp.where(work == cur, col, cpad),
                            axis=-1, keepdims=True)
            work = jnp.where(col == first, NEG_INF, work)

    # Soft CE against uniform(1/k over top-k):  lse - mean(top-k logits).
    uniform_ce = lse - topk_sum * (1.0 / float(k))
    smooth = label_smoothing * uniform_ce + (1.0 - label_smoothing) * hard_ce

    # Per-tile partial sums (exclude padded rows).
    s_hard = jnp.sum(hard_ce * correct * valid, keepdims=True)          # (1,1)
    s_smooth = jnp.sum(smooth * (1.0 - correct) * valid, keepdims=True)  # (1,1)
    s_corr = jnp.sum(correct * valid, keepdims=True)                     # (1,1)

    # One lane-dense (8,128) output block per tile: values in sublane 0,
    # lanes 0..2, zeros elsewhere.
    sub = jax.lax.broadcasted_iota(jnp.int32, (8, 128), 0)
    lane = jax.lax.broadcasted_iota(jnp.int32, (8, 128), 1)
    row0 = sub == 0
    out_ref[...] = (jnp.where(row0 & (lane == 0), s_hard, 0.0)
                    + jnp.where(row0 & (lane == 1), s_smooth, 0.0)
                    + jnp.where(row0 & (lane == 2), s_corr, 0.0))


def selective_smoothing_loss(logits, labels, *, k=5, label_smoothing=0.5,
                             smooth_loss_weight=0.5, weighted_average=True,
                             tile_n=None, vmem_budget_bytes=32 * 1024 * 1024):
    N, C = logits.shape
    assert k <= C, "top-k must not exceed the number of classes"
    itemsize = jnp.dtype(logits.dtype).itemsize

    # Pad the class axis to a multiple of 128 with a very negative value so
    # padded lanes never win max / top-k and contribute ~0 to the LSE.
    c_pad = -(-C // 128) * 128
    if c_pad != C:
        logits = jnp.pad(logits, ((0, 0), (0, c_pad - C)),
                         constant_values=NEG_INF)

    # Auto-size the row tile: double-buffered input block + ~4 f32-wide
    # in-kernel temporaries must fit a v7x-safe VMEM budget.
    # TODO(synk): for very large vocab (C >= ~64k) add a class-axis grid
    # dimension with online LSE + per-block top-k merge instead of shrinking
    # tile_n this far.
    if tile_n is None:
        bytes_per_row = c_pad * (2 * itemsize + 4 * 4)
        tile_n = vmem_budget_bytes // bytes_per_row
    tile_n = int(min(tile_n, 1024, -(-N // 8) * 8))
    tile_n = max(8, (tile_n // 8) * 8)

    # Pad rows so the grid divides evenly; padded rows are masked in-kernel.
    n_pad = -(-N // tile_n) * tile_n
    if n_pad != N:
        logits = jnp.pad(logits, ((0, n_pad - N), (0, 0)))
        labels = jnp.pad(labels, ((0, n_pad - N),))
    labels2d = labels.reshape(n_pad, 1).astype(jnp.int32)
    num_tiles = n_pad // tile_n

    kernel = functools.partial(_tile_loss_kernel, k=int(k),
                               label_smoothing=float(label_smoothing),
                               tile_n=tile_n, n_rows=N)

    est_bytes = (2 * tile_n * c_pad * itemsize        # double-buffered input
                 + 5 * tile_n * c_pad * 4             # f32 temporaries
                 + (2 << 20))                         # slack
    vmem_limit = int(min(60 * 1024 * 1024, max(16 * 1024 * 1024, est_bytes)))

    partials = pl.pallas_call(
        kernel,
        out_shape=jax.ShapeDtypeStruct((num_tiles * 8, 128), jnp.float32),
        grid_spec=pltpu.PrefetchScalarGridSpec(
            num_scalar_prefetch=0,
            grid=(num_tiles,),
            in_specs=[
                pl.BlockSpec((tile_n, c_pad), lambda i: (i, 0)),
                pl.BlockSpec((tile_n, 1), lambda i: (i, 0)),
            ],
            out_specs=pl.BlockSpec((8, 128), lambda i: (i, 0)),
        ),
        compiler_params=pltpu.CompilerParams(
            dimension_semantics=("parallel",),
            vmem_limit_bytes=vmem_limit),
    )(logits, labels2d)

    sums = jnp.sum(partials, axis=0)                  # (128,)
    s_hard, s_smooth, nc = sums[0], sums[1], sums[2]

    # --- Selective combination (glue, matches the PyTorch module exactly) ---
    n = jnp.float32(N)
    ni = n - nc

    hard_mean = jnp.where(nc > 0, s_hard / jnp.maximum(nc, 1.0), 0.0)
    smooth_mean = jnp.where(ni > 0, s_smooth / jnp.maximum(ni, 1.0), 0.0)

    if weighted_average:
        sw = smooth_loss_weight * (nc / n)
        hw = (1.0 - smooth_loss_weight) * (ni / n)
        total = sw + hw
        sw = sw / total
        hw = hw / total
    else:
        sw = jnp.float32(smooth_loss_weight)
        hw = jnp.float32(1.0 - smooth_loss_weight)

    return hard_mean * hw + smooth_mean * sw


def _reference(logits, labels, *, k=5, label_smoothing=0.5,
               smooth_loss_weight=0.5, weighted_average=True):
    """Pure-JAX reference mirroring the PyTorch module."""
    N, _ = logits.shape
    logp = jax.nn.log_softmax(logits.astype(jnp.float32), axis=-1)
    hard_ce = -jnp.take_along_axis(logp, labels[:, None], axis=-1)[:, 0]
    correct = (jnp.argmax(logits, axis=-1) == labels).astype(jnp.float32)
    _, topi = jax.lax.top_k(logits, k)
    uniform_ce = -jnp.take_along_axis(logp, topi, axis=-1).mean(axis=-1)
    smooth = label_smoothing * uniform_ce + (1.0 - label_smoothing) * hard_ce

    n = jnp.float32(N)
    nc = jnp.sum(correct)
    ni = n - nc
    hard_mean = jnp.where(nc > 0, jnp.sum(hard_ce * correct) / jnp.maximum(nc, 1.0), 0.0)
    smooth_mean = jnp.where(ni > 0, jnp.sum(smooth * (1.0 - correct)) / jnp.maximum(ni, 1.0), 0.0)
    if weighted_average:
        sw = smooth_loss_weight * (nc / n)
        hw = (1.0 - smooth_loss_weight) * (ni / n)
        total = sw + hw
        sw, hw = sw / total, hw / total
    else:
        sw, hw = smooth_loss_weight, 1.0 - smooth_loss_weight
    return hard_mean * hw + smooth_mean * sw


if __name__ == "__main__":
    key = jax.random.PRNGKey(0)
    batch, seq, vocab = 2, 8, 512
    N = batch * seq

    k_logits, k_labels = jax.random.split(key)
    logits = jax.random.normal(k_logits, (N, vocab), dtype=jnp.float32)
    labels = jax.random.randint(k_labels, (N,), 0, vocab, dtype=jnp.int32)
    # force a few rows to be "correct" so both loss branches are exercised
    argm = jnp.argmax(logits, axis=-1).astype(jnp.int32)
    force = jnp.zeros((N,), dtype=bool).at[jnp.array([0, 5, 9])].set(True)
    labels = jnp.where(force, argm, labels)

    loss = selective_smoothing_loss(logits, labels,
                                    k=5, label_smoothing=0.5,
                                    smooth_loss_weight=0.5,
                                    weighted_average=True)
    loss = jax.block_until_ready(loss)

    ref = _reference(logits, labels, k=5, label_smoothing=0.5,
                     smooth_loss_weight=0.5, weighted_average=True)
    assert jnp.allclose(loss, ref, rtol=1e-5, atol=1e-5), (loss, ref)

    print("KERNEL_OK")
</pallas_src>

<mosaic_0001>
module attributes {stable_mosaic.version = 11 : i64} {
  func.func @_tile_loss_kernel(%arg0: i32, %arg1: memref<16x512xf32, #tpu.memory_space<vmem>>, %arg2: memref<16x1xi32, #tpu.memory_space<vmem>>, %arg3: memref<8x128xf32, #tpu.memory_space<vmem>>) attributes {dimension_semantics = [#tpu.dimension_semantics<parallel>], iteration_bounds = array<i64: 1>, scalar_prefetch = 0 : i64, scratch_operands = 0 : i64, tpu.core_type = #tpu.core_type<tc>, window_params = [{transform_indices = @transform_0, window_bounds = array<i64: 16, 512>}, {transform_indices = @transform_1, window_bounds = array<i64: 16, 1>}, {transform_indices = @transform_2, window_bounds = array<i64: 8, 128>}]} {
    %c0 = arith.constant 0 : index
    %c0_0 = arith.constant 0 : index
    %0 = vector.load %arg1[%c0, %c0_0] : memref<16x512xf32, #tpu.memory_space<vmem>>, vector<16x512xf32>
    %c0_1 = arith.constant 0 : index
    %c0_2 = arith.constant 0 : index
    %1 = vector.load %arg2[%c0_1, %c0_2] : memref<16x1xi32, #tpu.memory_space<vmem>>, vector<16x1xi32>
    %2 = tpu.iota {dimensions = array<i32: 1>} : vector<1x512xi32>
    %c16_i32 = arith.constant 16 : i32
    %3 = arith.muli %arg0, %c16_i32 : i32
    %4 = tpu.iota {dimensions = array<i32: 0>} : vector<16x1xi32>
    %5 = vector.broadcast %3 : i32 to vector<16x1xi32>
    %6 = arith.addi %5, %4 : vector<16x1xi32>
    %c16_i32_3 = arith.constant 16 : i32
    %7 = vector.broadcast %c16_i32_3 : i32 to vector<16x1xi32>
    %8 = arith.cmpi slt, %6, %7 : vector<16x1xi32>
    %9 = arith.extui %8 : vector<16x1xi1> to vector<16x1xi32>
    %10 = arith.sitofp %9 : vector<16x1xi32> to vector<16x1xf32>
    %cst = arith.constant dense<0xFF800000> : vector<16xf32>
    %11 = vector.multi_reduction <maximumf>, %0, %cst [1] : vector<16x512xf32> to vector<16xf32>
    %12 = vector.shape_cast %11 : vector<16xf32> to vector<16x1xf32>
    %13 = vector.broadcast %12 : vector<16x1xf32> to vector<16x512xf32>
    %14 = arith.subf %0, %13 : vector<16x512xf32>
    %15 = math.exp %14 : vector<16x512xf32>
    %cst_4 = arith.constant dense<0.000000e+00> : vector<16xf32>
    %16 = vector.multi_reduction <add>, %15, %cst_4 [1] : vector<16x512xf32> to vector<16xf32>
    %17 = vector.shape_cast %16 : vector<16xf32> to vector<16x1xf32>
    %18 = math.log %17 : vector<16x1xf32>
    %19 = arith.addf %12, %18 : vector<16x1xf32>
    %20 = vector.broadcast %2 : vector<1x512xi32> to vector<16x512xi32>
    %21 = vector.broadcast %1 : vector<16x1xi32> to vector<16x512xi32>
    %22 = arith.cmpi eq, %20, %21 : vector<16x512xi32>
    %cst_5 = arith.constant 0.000000e+00 : f32
    %23 = vector.broadcast %cst_5 : f32 to vector<16x512xf32>
    %24 = arith.select %22, %0, %23 : vector<16x512xi1>, vector<16x512xf32>
    %cst_6 = arith.constant dense<0.000000e+00> : vector<16xf32>
    %25 = vector.multi_reduction <add>, %24, %cst_6 [1] : vector<16x512xf32> to vector<16xf32>
    %26 = vector.shape_cast %25 : vector<16xf32> to vector<16x1xf32>
    %27 = arith.subf %19, %26 : vector<16x1xf32>
    %28 = vector.broadcast %12 : vector<16x1xf32> to vector<16x512xf32>
    %29 = arith.cmpf oeq, %0, %28 : vector<16x512xf32>
    %c512_i32 = arith.constant 512 : i32
    %30 = vector.shape_cast %2 : vector<1x512xi32> to vector<1x512xi32>
    %31 = vector.broadcast %30 : vector<1x512xi32> to vector<16x512xi32>
    %32 = vector.broadcast %c512_i32 : i32 to vector<16x512xi32>
    %33 = arith.select %29, %31, %32 : vector<16x512xi1>, vector<16x512xi32>
    %cst_7 = arith.constant dense<2147483647> : vector<16xi32>
    %34 = vector.multi_reduction <minsi>, %33, %cst_7 [1] : vector<16x512xi32> to vector<16xi32>
    %35 = vector.shape_cast %34 : vector<16xi32> to vector<16x1xi32>
    %36 = arith.cmpi eq, %35, %1 : vector<16x1xi32>
    %37 = arith.extui %36 : vector<16x1xi1> to vector<16x1xi32>
    %38 = arith.sitofp %37 : vector<16x1xi32> to vector<16x1xf32>
    %39 = vector.broadcast %2 : vector<1x512xi32> to vector<16x512xi32>
    %40 = vector.broadcast %35 : vector<16x1xi32> to vector<16x512xi32>
    %41 = arith.cmpi eq, %39, %40 : vector<16x512xi32>
    %cst_8 = arith.constant -1.000000e+30 : f32
    %42 = vector.broadcast %cst_8 : f32 to vector<16x512xf32>
    %43 = arith.select %41, %42, %0 : vector<16x512xi1>, vector<16x512xf32>
    %cst_9 = arith.constant dense<0xFF800000> : vector<16xf32>
    %44 = vector.multi_reduction <maximumf>, %43, %cst_9 [1] : vector<16x512xf32> to vector<16xf32>
    %45 = vector.shape_cast %44 : vector<16xf32> to vector<16x1xf32>
    %46 = arith.addf %12, %45 : vector<16x1xf32>
    %47 = vector.broadcast %45 : vector<16x1xf32> to vector<16x512xf32>
    %48 = arith.cmpf oeq, %43, %47 : vector<16x512xf32>
    %c512_i32_10 = arith.constant 512 : i32
    %49 = vector.shape_cast %2 : vector<1x512xi32> to vector<1x512xi32>
    %50 = vector.broadcast %49 : vector<1x512xi32> to vector<16x512xi32>
    %51 = vector.broadcast %c512_i32_10 : i32 to vector<16x512xi32>
    %52 = arith.select %48, %50, %51 : vector<16x512xi1>, vector<16x512xi32>
    %cst_11 = arith.constant dense<2147483647> : vector<16xi32>
    %53 = vector.multi_reduction <minsi>, %52, %cst_11 [1] : vector<16x512xi32> to vector<16xi32>
    %54 = vector.shape_cast %53 : vector<16xi32> to vector<16x1xi32>
    %55 = vector.broadcast %2 : vector<1x512xi32> to vector<16x512xi32>
    %56 = vector.broadcast %54 : vector<16x1xi32> to vector<16x512xi32>
    %57 = arith.cmpi eq, %55, %56 : vector<16x512xi32>
    %cst_12 = arith.constant -1.000000e+30 : f32
    %58 = vector.broadcast %cst_12 : f32 to vector<16x512xf32>
    %59 = arith.select %57, %58, %43 : vector<16x512xi1>, vector<16x512xf32>
    %cst_13 = arith.constant dense<0xFF800000> : vector<16xf32>
    %60 = vector.multi_reduction <maximumf>, %59, %cst_13 [1] : vector<16x512xf32> to vector<16xf32>
    %61 = vector.shape_cast %60 : vector<16xf32> to vector<16x1xf32>
    %62 = arith.addf %46, %61 : vector<16x1xf32>
    %63 = vector.broadcast %61 : vector<16x1xf32> to vector<16x512xf32>
    %64 = arith.cmpf oeq, %59, %63 : vector<16x512xf32>
    %c512_i32_14 = arith.constant 512 : i32
    %65 = vector.shape_cast %2 : vector<1x512xi32> to vector<1x512xi32>
    %66 = vector.broadcast %65 : vector<1x512xi32> to vector<16x512xi32>
    %67 = vector.broadcast %c512_i32_14 : i32 to vector<16x512xi32>
    %68 = arith.select %64, %66, %67 : vector<16x512xi1>, vector<16x512xi32>
    %cst_15 = arith.constant dense<2147483647> : vector<16xi32>
    %69 = vector.multi_reduction <minsi>, %68, %cst_15 [1] : vector<16x512xi32> to vector<16xi32>
    %70 = vector.shape_cast %69 : vector<16xi32> to vector<16x1xi32>
    %71 = vector.broadcast %2 : vector<1x512xi32> to vector<16x512xi32>
    %72 = vector.broadcast %70 : vector<16x1xi32> to vector<16x512xi32>
    %73 = arith.cmpi eq, %71, %72 : vector<16x512xi32>
    %cst_16 = arith.constant -1.000000e+30 : f32
    %74 = vector.broadcast %cst_16 : f32 to vector<16x512xf32>
    %75 = arith.select %73, %74, %59 : vector<16x512xi1>, vector<16x512xf32>
    %cst_17 = arith.constant dense<0xFF800000> : vector<16xf32>
    %76 = vector.multi_reduction <maximumf>, %75, %cst_17 [1] : vector<16x512xf32> to vector<16xf32>
    %77 = vector.shape_cast %76 : vector<16xf32> to vector<16x1xf32>
    %78 = arith.addf %62, %77 : vector<16x1xf32>
    %79 = vector.broadcast %77 : vector<16x1xf32> to vector<16x512xf32>
    %80 = arith.cmpf oeq, %75, %79 : vector<16x512xf32>
    %c512_i32_18 = arith.constant 512 : i32
    %81 = vector.shape_cast %2 : vector<1x512xi32> to vector<1x512xi32>
    %82 = vector.broadcast %81 : vector<1x512xi32> to vector<16x512xi32>
    %83 = vector.broadcast %c512_i32_18 : i32 to vector<16x512xi32>
    %84 = arith.select %80, %82, %83 : vector<16x512xi1>, vector<16x512xi32>
    %cst_19 = arith.constant dense<2147483647> : vector<16xi32>
    %85 = vector.multi_reduction <minsi>, %84, %cst_19 [1] : vector<16x512xi32> to vector<16xi32>
    %86 = vector.shape_cast %85 : vector<16xi32> to vector<16x1xi32>
    %87 = vector.broadcast %2 : vector<1x512xi32> to vector<16x512xi32>
    %88 = vector.broadcast %86 : vector<16x1xi32> to vector<16x512xi32>
    %89 = arith.cmpi eq, %87, %88 : vector<16x512xi32>
    %cst_20 = arith.constant -1.000000e+30 : f32
    %90 = vector.broadcast %cst_20 : f32 to vector<16x512xf32>
    %91 = arith.select %89, %90, %75 : vector<16x512xi1>, vector<16x512xf32>
    %cst_21 = arith.constant dense<0xFF800000> : vector<16xf32>
    %92 = vector.multi_reduction <maximumf>, %91, %cst_21 [1] : vector<16x512xf32> to vector<16xf32>
    %93 = vector.shape_cast %92 : vector<16xf32> to vector<16x1xf32>
    %94 = arith.addf %78, %93 : vector<16x1xf32>
    %cst_22 = arith.constant 2.000000e-01 : f32
    %95 = vector.broadcast %cst_22 : f32 to vector<16x1xf32>
    %96 = arith.mulf %94, %95 : vector<16x1xf32>
    %97 = arith.subf %19, %96 : vector<16x1xf32>
    %cst_23 = arith.constant 5.000000e-01 : f32
    %98 = vector.broadcast %cst_23 : f32 to vector<16x1xf32>
    %99 = arith.mulf %98, %97 : vector<16x1xf32>
    %cst_24 = arith.constant 5.000000e-01 : f32
    %100 = vector.broadcast %cst_24 : f32 to vector<16x1xf32>
    %101 = arith.mulf %100, %27 : vector<16x1xf32>
    %102 = arith.addf %99, %101 : vector<16x1xf32>
    %103 = arith.mulf %27, %38 : vector<16x1xf32>
    %104 = arith.mulf %103, %10 : vector<16x1xf32>
    %105 = vector.shape_cast %104 : vector<16x1xf32> to vector<1x16x1xf32>
    %cst_25 = arith.constant dense<0.000000e+00> : vector<1xf32>
    %106 = vector.multi_reduction <add>, %105, %cst_25 [1, 2] : vector<1x16x1xf32> to vector<1xf32>
    %107 = vector.shape_cast %106 : vector<1xf32> to vector<1x1x1xf32>
    %108 = vector.extract %107[0, 0, 0] : f32 from vector<1x1x1xf32>
    %109 = vector.broadcast %108 : f32 to vector<1x1xf32>
    %cst_26 = arith.constant 1.000000e+00 : f32
    %110 = vector.broadcast %cst_26 : f32 to vector<16x1xf32>
    %111 = arith.subf %110, %38 : vector<16x1xf32>
    %112 = arith.mulf %102, %111 : vector<16x1xf32>
    %113 = arith.mulf %112, %10 : vector<16x1xf32>
    %114 = vector.shape_cast %113 : vector<16x1xf32> to vector<1x16x1xf32>
    %cst_27 = arith.constant dense<0.000000e+00> : vector<1xf32>
    %115 = vector.multi_reduction <add>, %114, %cst_27 [1, 2] : vector<1x16x1xf32> to vector<1xf32>
    %116 = vector.shape_cast %115 : vector<1xf32> to vector<1x1x1xf32>
    %117 = vector.extract %116[0, 0, 0] : f32 from vector<1x1x1xf32>
    %118 = vector.broadcast %117 : f32 to vector<1x1xf32>
    %119 = arith.mulf %38, %10 : vector<16x1xf32>
    %120 = vector.shape_cast %119 : vector<16x1xf32> to vector<1x16x1xf32>
    %cst_28 = arith.constant dense<0.000000e+00> : vector<1xf32>
    %121 = vector.multi_reduction <add>, %120, %cst_28 [1, 2] : vector<1x16x1xf32> to vector<1xf32>
    %122 = vector.shape_cast %121 : vector<1xf32> to vector<1x1x1xf32>
    %123 = vector.extract %122[0, 0, 0] : f32 from vector<1x1x1xf32>
    %124 = vector.broadcast %123 : f32 to vector<1x1xf32>
    %125 = tpu.iota {dimensions = array<i32: 0>} : vector<8x128xi32>
    %126 = tpu.iota {dimensions = array<i32: 1>} : vector<8x128xi32>
    %c0_i32 = arith.constant 0 : i32
    %127 = vector.broadcast %c0_i32 : i32 to vector<8x128xi32>
    %128 = arith.cmpi eq, %125, %127 : vector<8x128xi32>
    %c0_i32_29 = arith.constant 0 : i32
    %129 = vector.broadcast %c0_i32_29 : i32 to vector<8x128xi32>
    %130 = arith.cmpi eq, %126, %129 : vector<8x128xi32>
    %131 = arith.andi %128, %130 : vector<8x128xi1>
    %cst_30 = arith.constant 0.000000e+00 : f32
    %132 = vector.shape_cast %109 : vector<1x1xf32> to vector<1x1xf32>
    %133 = vector.broadcast %132 : vector<1x1xf32> to vector<8x128xf32>
    %134 = vector.broadcast %cst_30 : f32 to vector<8x128xf32>
    %135 = arith.select %131, %133, %134 : vector<8x128xi1>, vector<8x128xf32>
    %c1_i32 = arith.constant 1 : i32
    %136 = vector.broadcast %c1_i32 : i32 to vector<8x128xi32>
    %137 = arith.cmpi eq, %126, %136 : vector<8x128xi32>
    %138 = arith.andi %128, %137 : vector<8x128xi1>
    %cst_31 = arith.constant 0.000000e+00 : f32
    %139 = vector.shape_cast %118 : vector<1x1xf32> to vector<1x1xf32>
    %140 = vector.broadcast %139 : vector<1x1xf32> to vector<8x128xf32>
    %141 = vector.broadcast %cst_31 : f32 to vector<8x128xf32>
    %142 = arith.select %138, %140, %141 : vector<8x128xi1>, vector<8x128xf32>
    %143 = arith.addf %135, %142 : vector<8x128xf32>
    %c2_i32 = arith.constant 2 : i32
    %144 = vector.broadcast %c2_i32 : i32 to vector<8x128xi32>
    %145 = arith.cmpi eq, %126, %144 : vector<8x128xi32>
    %146 = arith.andi %128, %145 : vector<8x128xi1>
    %cst_32 = arith.constant 0.000000e+00 : f32
    %147 = vector.shape_cast %124 : vector<1x1xf32> to vector<1x1xf32>
    %148 = vector.broadcast %147 : vector<1x1xf32> to vector<8x128xf32>
    %149 = vector.broadcast %cst_32 : f32 to vector<8x128xf32>
    %150 = arith.select %146, %148, %149 : vector<8x128xi1>, vector<8x128xf32>
    %151 = arith.addf %143, %150 : vector<8x128xf32>
    %c0_33 = arith.constant 0 : index
    %c0_34 = arith.constant 0 : index
    %152 = vector.load %arg3[%c0_33, %c0_34] : memref<8x128xf32, #tpu.memory_space<vmem>>, vector<8x128xf32>
    tpu.vector_store %arg3[%c0_33, %c0_34], %151 {strides = array<i32>} : memref<8x128xf32, #tpu.memory_space<vmem>>, vector<8x128xf32>,
    return
  }
  func.func @transform_0(%arg0: i32) -> (i32, i32) {
    %c0_i32 = arith.constant 0 : i32
    %c0_i32_0 = arith.constant 0 : i32
    return %arg0, %c0_i32 : i32, i32
  }
  func.func @transform_1(%arg0: i32) -> (i32, i32) {
    %c0_i32 = arith.constant 0 : i32
    %c0_i32_0 = arith.constant 0 : i32
    return %arg0, %c0_i32 : i32, i32
  }
  func.func @transform_2(%arg0: i32) -> (i32, i32) {
    %c0_i32 = arith.constant 0 : i32
    %c0_i32_0 = arith.constant 0 : i32
    return %arg0, %c0_i32 : i32, i32
  }
}

</mosaic_0001>

<llo_original>
// kernel: tpu_custom_call.1
$region0: #{tpu_custom_call.1}
  #allocation0 [shape = 'u32[]', space=smem, size = 0x4, offset = 0x4, fixed_abs, tag = 'smem constant byte address 0x4 - core index']
  #allocation1 [shape = 'u32[144,128]{1,0:T(1,128)}', space=vmem, size = 0x12000, scoped, tag = 'internal scratch']
  %s0 = inlined_call_operand.hbm [shape: f32[16,512], index: 0, kind: input, shape index: {}]
  %s1 = inlined_call_operand.vmem [shape: s32[16,1], index: 1, kind: input, shape index: {}]
  %s2 = inlined_call_operand.hbm [shape: f32[8,128], index: 2, kind: output, shape index: {}]
  %s3 = sld [smem:[#allocation0]]
  $region22: #{tpu_custom_call.1} parent=0
    _
  %s5 = ssub.s32 1, %s3
  %s6 = scalar_select 0, %s5, %s3
  $region1: #{tpu_custom_call.1} parent=0
    #allocation2 [shape = 'u8[32768]{0}', space=vmem, size = 0x8000, scoped, tag = 'input window, operand 0, single buffered']
    #allocation3 [shape = 's32[1]{0}', space=sflag, size = 0x4, scoped, tag = 'scoped memory for tpu_custom_call.1']
    #allocation4 [shape = 's32[1]{0}', space=sflag, size = 0x4, scoped, tag = 'scoped memory for tpu_custom_call.1']
    #allocation5 [shape = 'u8[4096]{0}', space=vmem, size = 0x1000, scoped, tag = 'output window, operand 0, single buffered']
    %7 = vsyncpa [#allocation3], 0
    %8 = vsyncpa [#allocation4], 0
    // Predicated region
    $region2: #{tpu_custom_call.1} parent=1 // pred_check
      _
    $region3: #{tpu_custom_call.1} parent=1 // pred_check_branch
      %10 = sbr.rel (0) target = $region5
    $region4: #{tpu_custom_call.1} parent=1 // pred_region
      %s12 = ssub.s32 1024, 1024
      %13 = vsyncadd [#allocation3], %s12
      %s14 = sshll.u32 [#allocation2], 4
      %s15 = int_to_ptr.vmem [resolvable:$true] %s14
      %20 = dma.hbm_to_vmem [thread:$0]  %s0, 1024, %s15, [#allocation3], 512, 512, 32
    $region5: #{tpu_custom_call.1} parent=1 // pred_fallthru
      _
    // Predicated region
    $region6: #{tpu_custom_call.1} parent=1 // pred_check
      _
    $region7: #{tpu_custom_call.1} parent=1 // pred_check_branch
      %22 = sbr.rel (0) target = $region9
    $region8: #{tpu_custom_call.1} parent=1 // pred_region
      _
    $region9: #{tpu_custom_call.1} parent=1 // pred_fallthru
      _
    // Predicated region
    $region10: #{tpu_custom_call.1} parent=1 // pred_check
      _
    $region11: #{tpu_custom_call.1} parent=1 // pred_check_branch
      %24 = sbr.rel (0) target = $region13
    $region12: #{tpu_custom_call.1} parent=1 // pred_region
      %25 = dma.done [#allocation3], 1024
    $region13: #{tpu_custom_call.1} parent=1 // pred_fallthru
      _
    %v26 = vld [vmem:[#allocation2] sm:$0xff]
    %v27 = vld [vmem:[#allocation2 + $0x8] sm:$0xff]
    %v28 = vld [vmem:[#allocation2 + $0x10] sm:$0xff]
    %v29 = vld [vmem:[#allocation2 + $0x18] sm:$0xff]
    %v30 = vld [vmem:[#allocation2 + $0x20] sm:$0xff]
    %v31 = vld [vmem:[#allocation2 + $0x28] sm:$0xff]
    %v32 = vld [vmem:[#allocation2 + $0x30] sm:$0xff]
    %v33 = vld [vmem:[#allocation2 + $0x38] sm:$0xff]
    %v34 = vld [vmem:[%s1] sm:$0xff]
    %v35 = vld [vmem:[%s1 + $0x8] sm:$0xff]
    %v36 = vlaneseq
    %v37 = vand.u32 %v36, 127
    %v38 = vadd.s32 %v37, 128
    %v39 = vadd.s32 %v37, 256
    %v40 = vadd.s32 %v37, 384
    %s41 = smul.u32 0, 16
    %v42 = vlaneseq
    %v43 = vshrl.u32 %v42, 7
    %v44 = vadd.s32 %v43, 8
    %v45 = vstv %s41
    %v46 = vadd.s32 %v45, %v43
    %v47 = vadd.s32 %v45, %v44
    %vm48 = vcmp.lt.s32.totalorder %v46, 16
    %vm49 = vcmp.lt.s32.totalorder %v47, 16
    %v50 = vsel %vm48, 1, 0
    %v51 = vsel %vm49, 1, 0
    %v52 = vcvt.s32.f32 %v50
    %v53 = vcvt.s32.f32 %v51
    %v54 = vmax.f32 %v26, %v28
    %v55 = vmax.f32 %v27, %v29
    %v56 = vmax.f32 %v54, %v55
    %57 = vmax.xlane.f32.xlu0 %v56
    %v58 = vpop.xlane.xlu0 %57
    %v59 = vmax.f32 %v30, %v32
    %v60 = vmax.f32 %v31, %v33
    %v61 = vmax.f32 %v59, %v60
    %62 = vmax.xlane.f32.xlu0 %v61
    %v63 = vpop.xlane.xlu0 %62
    %v64 = vsub.f32 %v26, %v58
    %v65 = vsub.f32 %v27, %v58
    %v66 = vsub.f32 %v28, %v58
    %v67 = vsub.f32 %v29, %v58
    %v68 = vsub.f32 %v30, %v63
    %v69 = vsub.f32 %v31, %v63
    %v70 = vsub.f32 %v32, %v63
    %v71 = vsub.f32 %v33, %v63
    %v72 = vmul.f32 %v64, 1.442695
    %v73 = vpow.pop %v72
    %v74 = vmul.f32 %v65, 1.442695
    %v75 = vpow.pop %v74
    %v76 = vmul.f32 %v66, 1.442695
    %v77 = vpow.pop %v76
    %v78 = vmul.f32 %v67, 1.442695
    %v79 = vpow.pop %v78
    %v80 = vmul.f32 %v68, 1.442695
    %v81 = vpow.pop %v80
    %v82 = vmul.f32 %v69, 1.442695
    %v83 = vpow.pop %v82
    %v84 = vmul.f32 %v70, 1.442695
    %v85 = vpow.pop %v84
    %v86 = vmul.f32 %v71, 1.442695
    %v87 = vpow.pop %v86
    %v88 = vadd.f32 %v73, %v75
    %v89 = vadd.f32 %v88, %v77
    %v90 = vadd.f32 %v89, %v79
    %91 = vadd.xlane.f32.xlu0 %v90
    %v92 = vpop.xlane.xlu0 %91
    %v93 = vadd.f32 %v81, %v83
    %v94 = vadd.f32 %v93, %v85
    %v95 = vadd.f32 %v94, %v87
    %96 = vadd.xlane.f32.xlu0 %v95
    %v97 = vpop.xlane.xlu0 %96
    %v98 = vlog2.pop %v92
    %v99 = vmul.f32 %v98, 0.6931472
    %v100 = vlog2.pop %v97
    %v101 = vmul.f32 %v100, 0.6931472
    %v102 = vadd.f32 %v58, %v99
    %v103 = vadd.f32 %v63, %v101
    %104 = vset.pattern.permute.xlu0 0
    %105 = vperm.xlu0 %104, %v34
    %v106 = vpop.permute.xlu0 %105
    %107 = vset.pattern.permute.xlu0 0
    %108 = vperm.xlu0 %107, %v35
    %v109 = vpop.permute.xlu0 %108
    %vm110 = vcmp.eq.s32.totalorder %v37, %v106
    %vm111 = vcmp.eq.s32.totalorder %v38, %v106
    %vm112 = vcmp.eq.s32.totalorder %v39, %v106
    %vm113 = vcmp.eq.s32.totalorder %v40, %v106
    %vm114 = vcmp.eq.s32.totalorder %v37, %v109
    %vm115 = vcmp.eq.s32.totalorder %v38, %v109
    %vm116 = vcmp.eq.s32.totalorder %v39, %v109
    %vm117 = vcmp.eq.s32.totalorder %v40, %v109
    %v118 = vsel %vm110, %v26, 0.0
    %v119 = vsel %vm111, %v27, 0.0
    %v120 = vsel %vm112, %v28, 0.0
    %v121 = vsel %vm113, %v29, 0.0
    %v122 = vsel %vm114, %v30, 0.0
    %v123 = vsel %vm115, %v31, 0.0
    %v124 = vsel %vm116, %v32, 0.0
    %v125 = vsel %vm117, %v33, 0.0
    %v126 = vadd.f32 %v118, %v119
    %v127 = vadd.f32 %v126, %v120
    %v128 = vadd.f32 %v127, %v121
    %129 = vadd.xlane.f32.xlu0 %v128
    %v130 = vpop.xlane.xlu0 %129
    %v131 = vadd.f32 %v122, %v123
    %v132 = vadd.f32 %v131, %v124
    %v133 = vadd.f32 %v132, %v125
    %134 = vadd.xlane.f32.xlu0 %v133
    %v135 = vpop.xlane.xlu0 %134
    %v136 = vsub.f32 %v102, %v130
    %v137 = vsub.f32 %v103, %v135
    %vm138 = vcmp.eq.f32.partialorder %v26, %v58
    %vm139 = vcmp.eq.f32.partialorder %v27, %v58
    %vm140 = vcmp.eq.f32.partialorder %v28, %v58
    %vm141 = vcmp.eq.f32.partialorder %v29, %v58
    %vm142 = vcmp.eq.f32.partialorder %v30, %v63
    %vm143 = vcmp.eq.f32.partialorder %v31, %v63
    %vm144 = vcmp.eq.f32.partialorder %v32, %v63
    %vm145 = vcmp.eq.f32.partialorder %v33, %v63
    %v146 = vsel %vm138, %v37, 512
    %v147 = vsel %vm139, %v38, 512
    %v148 = vsel %vm140, %v39, 512
    %v149 = vsel %vm141, %v40, 512
    %v150 = vsel %vm142, %v37, 512
    %v151 = vsel %vm143, %v38, 512
    %v152 = vsel %vm144, %v39, 512
    %v153 = vsel %vm145, %v40, 512
    %vm154 = vcmp.lt.s32.totalorder %v146, %v148
    %v155 = vsel %vm154, %v146, %v148
    %vm156 = vcmp.lt.s32.totalorder %v147, %v149
    %v157 = vsel %vm156, %v147, %v149
    %vm158 = vcmp.lt.s32.totalorder %v155, %v157
    %v159 = vsel %vm158, %v155, %v157
    %v160 = vand.u32 %v159, 65535
    %v161 = vshra.s32 %v159, 16
    %v162 = vcvt.s32.f32 %v160
    %v163 = vcvt.s32.f32 %v161
    %164 = vmin.xlane.f32.xlu0 %v163
    %v165 = vpop.xlane.xlu0 %164
    %vm166 = vcmp.eq.f32.partialorder %v163, %v165
    %v167 = vsel %vm166, %v162, inf
    %168 = vmin.xlane.f32.xlu0 %v167
    %v169 = vpop.xlane.xlu0 %168
    %v170 = vcvt.f32.s32 %v169
    %v171 = vcvt.f32.s32 %v165
    %v172 = vshll.u32 %v171, 16
    %v173 = vadd.s32 %v172, %v170
    %vm174 = vcmp.lt.s32.totalorder %v150, %v152
    %v175 = vsel %vm174, %v150, %v152
    %vm176 = vcmp.lt.s32.totalorder %v151, %v153
    %v177 = vsel %vm176, %v151, %v153
    %vm178 = vcmp.lt.s32.totalorder %v175, %v177
    %v179 = vsel %vm178, %v175, %v177
    %v180 = vand.u32 %v179, 65535
    %v181 = vshra.s32 %v179, 16
    %v182 = vcvt.s32.f32 %v180
    %v183 = vcvt.s32.f32 %v181
    %184 = vmin.xlane.f32.xlu0 %v183
    %v185 = vpop.xlane.xlu0 %184
    %vm186 = vcmp.eq.f32.partialorder %v183, %v185
    %v187 = vsel %vm186, %v182, inf
    %188 = vmin.xlane.f32.xlu0 %v187
    %v189 = vpop.xlane.xlu0 %188
    %v190 = vcvt.f32.s32 %v189
    %v191 = vcvt.f32.s32 %v185
    %v192 = vshll.u32 %v191, 16
    %v193 = vadd.s32 %v192, %v190
    %vm194 = vcmp.eq.s32.totalorder %v173, %v34
    %vm195 = vcmp.eq.s32.totalorder %v193, %v35
    %v196 = vsel %vm194, 1, 0
    %v197 = vsel %vm195, 1, 0
    %v198 = vcvt.s32.f32 %v196
    %v199 = vcvt.s32.f32 %v197
    %vm200 = vcmp.eq.s32.totalorder %v37, %v173
    %vm201 = vcmp.eq.s32.totalorder %v38, %v173
    %vm202 = vcmp.eq.s32.totalorder %v39, %v173
    %vm203 = vcmp.eq.s32.totalorder %v40, %v173
    %vm204 = vcmp.eq.s32.totalorder %v37, %v193
    %vm205 = vcmp.eq.s32.totalorder %v38, %v193
    %vm206 = vcmp.eq.s32.totalorder %v39, %v193
    %vm207 = vcmp.eq.s32.totalorder %v40, %v193
    %v208 = vsel %vm200, -1e+30, %v26
    %v209 = vsel %vm201, -1e+30, %v27
    %v210 = vsel %vm202, -1e+30, %v28
    %v211 = vsel %vm203, -1e+30, %v29
    %v212 = vsel %vm204, -1e+30, %v30
    %v213 = vsel %vm205, -1e+30, %v31
    %v214 = vsel %vm206, -1e+30, %v32
    %v215 = vsel %vm207, -1e+30, %v33
    %v216 = vmax.f32 %v208, %v210
    %v217 = vmax.f32 %v209, %v211
    %v218 = vmax.f32 %v216, %v217
    %219 = vmax.xlane.f32.xlu0 %v218
    %v220 = vpop.xlane.xlu0 %219
    %v221 = vmax.f32 %v212, %v214
    %v222 = vmax.f32 %v213, %v215
    %v223 = vmax.f32 %v221, %v222
    %224 = vmax.xlane.f32.xlu0 %v223
    %v225 = vpop.xlane.xlu0 %224
    %v226 = vadd.f32 %v58, %v220
    %v227 = vadd.f32 %v63, %v225
    %vm228 = vcmp.eq.f32.partialorder %v208, %v220
    %vm229 = vcmp.eq.f32.partialorder %v209, %v220
    %vm230 = vcmp.eq.f32.partialorder %v210, %v220
    %vm231 = vcmp.eq.f32.partialorder %v211, %v220
    %vm232 = vcmp.eq.f32.partialorder %v212, %v225
    %vm233 = vcmp.eq.f32.partialorder %v213, %v225
    %vm234 = vcmp.eq.f32.partialorder %v214, %v225
    %vm235 = vcmp.eq.f32.partialorder %v215, %v225
    %v236 = vsel %vm228, %v37, 512
    %v237 = vsel %vm229, %v38, 512
    %v238 = vsel %vm230, %v39, 512
    %v239 = vsel %vm231, %v40, 512
    %v240 = vsel %vm232, %v37, 512
    %v241 = vsel %vm233, %v38, 512
    %v242 = vsel %vm234, %v39, 512
    %v243 = vsel %vm235, %v40, 512
    %vm244 = vcmp.lt.s32.totalorder %v236, %v238
    %v245 = vsel %vm244, %v236, %v238
    %vm246 = vcmp.lt.s32.totalorder %v237, %v239
    %v247 = vsel %vm246, %v237, %v239
    %vm248 = vcmp.lt.s32.totalorder %v245, %v247
    %v249 = vsel %vm248, %v245, %v247
    %v250 = vand.u32 %v249, 65535
    %v251 = vshra.s32 %v249, 16
    %v252 = vcvt.s32.f32 %v250
    %v253 = vcvt.s32.f32 %v251
    %254 = vmin.xlane.f32.xlu0 %v253
    %v255 = vpop.xlane.xlu0 %254
    %vm256 = vcmp.eq.f32.partialorder %v253, %v255
    %v257 = vsel %vm256, %v252, inf
    %258 = vmin.xlane.f32.xlu0 %v257
    %v259 = vpop.xlane.xlu0 %258
    %v260 = vcvt.f32.s32 %v259
    %v261 = vcvt.f32.s32 %v255
    %v262 = vshll.u32 %v261, 16
    %v263 = vadd.s32 %v262, %v260
    %vm264 = vcmp.lt.s32.totalorder %v240, %v242
    %v265 = vsel %vm264, %v240, %v242
    %vm266 = vcmp.lt.s32.totalorder %v241, %v243
    %v267 = vsel %vm266, %v241, %v243
    %vm268 = vcmp.lt.s32.totalorder %v265, %v267
    %v269 = vsel %vm268, %v265, %v267
    %v270 = vand.u32 %v269, 65535
    %v271 = vshra.s32 %v269, 16
    %v272 = vcvt.s32.f32 %v270
    %v273 = vcvt.s32.f32 %v271
    %274 = vmin.xlane.f32.xlu0 %v273
    %v275 = vpop.xlane.xlu0 %274
    %vm276 = vcmp.eq.f32.partialorder %v273, %v275
    %v277 = vsel %vm276, %v272, inf
    %278 = vmin.xlane.f32.xlu0 %v277
    %v279 = vpop.xlane.xlu0 %278
    %v280 = vcvt.f32.s32 %v279
    %v281 = vcvt.f32.s32 %v275
    %v282 = vshll.u32 %v281, 16
    %v283 = vadd.s32 %v282, %v280
    %vm284 = vcmp.eq.s32.totalorder %v37, %v263
    %vm285 = vcmp.eq.s32.totalorder %v38, %v263
    %vm286 = vcmp.eq.s32.totalorder %v39, %v263
    %vm287 = vcmp.eq.s32.totalorder %v40, %v263
    %vm288 = vcmp.eq.s32.totalorder %v37, %v283
    %vm289 = vcmp.eq.s32.totalorder %v38, %v283
    %vm290 = vcmp.eq.s32.totalorder %v39, %v283
    %vm291 = vcmp.eq.s32.totalorder %v40, %v283
    %v292 = vsel %vm284, -1e+30, %v208
    %v293 = vsel %vm285, -1e+30, %v209
    %v294 = vsel %vm286, -1e+30, %v210
    %v295 = vsel %vm287, -1e+30, %v211
    %v296 = vsel %vm288, -1e+30, %v212
    %v297 = vsel %vm289, -1e+30, %v213
    %v298 = vsel %vm290, -1e+30, %v214
    %v299 = vsel %vm291, -1e+30, %v215
    %v300 = vmax.f32 %v292, %v294
    %v301 = vmax.f32 %v293, %v295
    %v302 = vmax.f32 %v300, %v301
    %303 = vmax.xlane.f32.xlu0 %v302
    %v304 = vpop.xlane.xlu0 %303
    %v305 = vmax.f32 %v296, %v298
    %v306 = vmax.f32 %v297, %v299
    %v307 = vmax.f32 %v305, %v306
    %308 = vmax.xlane.f32.xlu0 %v307
    %v309 = vpop.xlane.xlu0 %308
    %v310 = vadd.f32 %v226, %v304
    %v311 = vadd.f32 %v227, %v309
    %vm312 = vcmp.eq.f32.partialorder %v292, %v304
    %vm313 = vcmp.eq.f32.partialorder %v293, %v304
    %vm314 = vcmp.eq.f32.partialorder %v294, %v304
    %vm315 = vcmp.eq.f32.partialorder %v295, %v304
    %vm316 = vcmp.eq.f32.partialorder %v296, %v309
    %vm317 = vcmp.eq.f32.partialorder %v297, %v309
    %vm318 = vcmp.eq.f32.partialorder %v298, %v309
    %vm319 = vcmp.eq.f32.partialorder %v299, %v309
    %v320 = vsel %vm312, %v37, 512
    %v321 = vsel %vm313, %v38, 512
    %v322 = vsel %vm314, %v39, 512
    %v323 = vsel %vm315, %v40, 512
    %v324 = vsel %vm316, %v37, 512
    %v325 = vsel %vm317, %v38, 512
    %v326 = vsel %vm318, %v39, 512
    %v327 = vsel %vm319, %v40, 512
    %vm328 = vcmp.lt.s32.totalorder %v320, %v322
    %v329 = vsel %vm328, %v320, %v322
    %vm330 = vcmp.lt.s32.totalorder %v321, %v323
    %v331 = vsel %vm330, %v321, %v323
    %vm332 = vcmp.lt.s32.totalorder %v329, %v331
    %v333 = vsel %vm332, %v329, %v331
    %v334 = vand.u32 %v333, 65535
    %v335 = vshra.s32 %v333, 16
    %v336 = vcvt.s32.f32 %v334
    %v337 = vcvt.s32.f32 %v335
    %338 = vmin.xlane.f32.xlu0 %v337
    %v339 = vpop.xlane.xlu0 %338
    %vm340 = vcmp.eq.f32.partialorder %v337, %v339
    %v341 = vsel %vm340, %v336, inf
    %342 = vmin.xlane.f32.xlu0 %v341
    %v343 = vpop.xlane.xlu0 %342
    %v344 = vcvt.f32.s32 %v343
    %v345 = vcvt.f32.s32 %v339
    %v346 = vshll.u32 %v345, 16
    %v347 = vadd.s32 %v346, %v344
    %vm348 = vcmp.lt.s32.totalorder %v324, %v326
    %v349 = vsel %vm348, %v324, %v326
    %vm350 = vcmp.lt.s32.totalorder %v325, %v327
    %v351 = vsel %vm350, %v325, %v327
    %vm352 = vcmp.lt.s32.totalorder %v349, %v351
    %v353 = vsel %vm352, %v349, %v351
    %v354 = vand.u32 %v353, 65535
    %v355 = vshra.s32 %v353, 16
    %v356 = vcvt.s32.f32 %v354
    %v357 = vcvt.s32.f32 %v355
    %358 = vmin.xlane.f32.xlu0 %v357
    %v359 = vpop.xlane.xlu0 %358
    %vm360 = vcmp.eq.f32.partialorder %v357, %v359
    %v361 = vsel %vm360, %v356, inf
    %362 = vmin.xlane.f32.xlu0 %v361
    %v363 = vpop.xlane.xlu0 %362
    %v364 = vcvt.f32.s32 %v363
    %v365 = vcvt.f32.s32 %v359
    %v366 = vshll.u32 %v365, 16
    %v367 = vadd.s32 %v366, %v364
    %vm368 = vcmp.eq.s32.totalorder %v37, %v347
    %vm369 = vcmp.eq.s32.totalorder %v38, %v347
    %vm370 = vcmp.eq.s32.totalorder %v39, %v347
    %vm371 = vcmp.eq.s32.totalorder %v40, %v347
    %vm372 = vcmp.eq.s32.totalorder %v37, %v367
    %vm373 = vcmp.eq.s32.totalorder %v38, %v367
    %vm374 = vcmp.eq.s32.totalorder %v39, %v367
    %vm375 = vcmp.eq.s32.totalorder %v40, %v367
    %v376 = vsel %vm368, -1e+30, %v292
    %v377 = vsel %vm369, -1e+30, %v293
    %v378 = vsel %vm370, -1e+30, %v294
    %v379 = vsel %vm371, -1e+30, %v295
    %v380 = vsel %vm372, -1e+30, %v296
    %v381 = vsel %vm373, -1e+30, %v297
    %v382 = vsel %vm374, -1e+30, %v298
    %v383 = vsel %vm375, -1e+30, %v299
    %v384 = vmax.f32 %v376, %v378
    %v385 = vmax.f32 %v377, %v379
    %v386 = vmax.f32 %v384, %v385
    %387 = vmax.xlane.f32.xlu0 %v386
    %v388 = vpop.xlane.xlu0 %387
    %v389 = vmax.f32 %v380, %v382
    %v390 = vmax.f32 %v381, %v383
    %v391 = vmax.f32 %v389, %v390
    %392 = vmax.xlane.f32.xlu0 %v391
    %v393 = vpop.xlane.xlu0 %392
    %v394 = vadd.f32 %v310, %v388
    %v395 = vadd.f32 %v311, %v393
    %vm396 = vcmp.eq.f32.partialorder %v376, %v388
    %vm397 = vcmp.eq.f32.partialorder %v377, %v388
    %vm398 = vcmp.eq.f32.partialorder %v378, %v388
    %vm399 = vcmp.eq.f32.partialorder %v379, %v388
    %vm400 = vcmp.eq.f32.partialorder %v380, %v393
    %vm401 = vcmp.eq.f32.partialorder %v381, %v393
    %vm402 = vcmp.eq.f32.partialorder %v382, %v393
    %vm403 = vcmp.eq.f32.partialorder %v383, %v393
    %v404 = vsel %vm396, %v37, 512
    %v405 = vsel %vm397, %v38, 512
    %v406 = vsel %vm398, %v39, 512
    %v407 = vsel %vm399, %v40, 512
    %v408 = vsel %vm400, %v37, 512
    %v409 = vsel %vm401, %v38, 512
    %v410 = vsel %vm402, %v39, 512
    %v411 = vsel %vm403, %v40, 512
    %vm412 = vcmp.lt.s32.totalorder %v404, %v406
    %v413 = vsel %vm412, %v404, %v406
    %vm414 = vcmp.lt.s32.totalorder %v405, %v407
    %v415 = vsel %vm414, %v405, %v407
    %vm416 = vcmp.lt.s32.totalorder %v413, %v415
    %v417 = vsel %vm416, %v413, %v415
    %v418 = vand.u32 %v417, 65535
    %v419 = vshra.s32 %v417, 16
    %v420 = vcvt.s32.f32 %v418
    %v421 = vcvt.s32.f32 %v419
    %422 = vmin.xlane.f32.xlu0 %v421
    %v423 = vpop.xlane.xlu0 %422
    %vm424 = vcmp.eq.f32.partialorder %v421, %v423
    %v425 = vsel %vm424, %v420, inf
    %426 = vmin.xlane.f32.xlu0 %v425
    %v427 = vpop.xlane.xlu0 %426
    %v428 = vcvt.f32.s32 %v427
    %v429 = vcvt.f32.s32 %v423
    %v430 = vshll.u32 %v429, 16
    %v431 = vadd.s32 %v430, %v428
    %vm432 = vcmp.lt.s32.totalorder %v408, %v410
    %v433 = vsel %vm432, %v408, %v410
    %vm434 = vcmp.lt.s32.totalorder %v409, %v411
    %v435 = vsel %vm434, %v409, %v411
    %vm436 = vcmp.lt.s32.totalorder %v433, %v435
    %v437 = vsel %vm436, %v433, %v435
    %v438 = vand.u32 %v437, 65535
    %v439 = vshra.s32 %v437, 16
    %v440 = vcvt.s32.f32 %v438
    %v441 = vcvt.s32.f32 %v439
    %442 = vmin.xlane.f32.xlu0 %v441
    %v443 = vpop.xlane.xlu0 %442
    %vm444 = vcmp.eq.f32.partialorder %v441, %v443
    %v445 = vsel %vm444, %v440, inf
    %446 = vmin.xlane.f32.xlu0 %v445
    %v447 = vpop.xlane.xlu0 %446
    %v448 = vcvt.f32.s32 %v447
    %v449 = vcvt.f32.s32 %v443
    %v450 = vshll.u32 %v449, 16
    %v451 = vadd.s32 %v450, %v448
    %vm452 = vcmp.eq.s32.totalorder %v37, %v431
    %vm453 = vcmp.eq.s32.totalorder %v38, %v431
    %vm454 = vcmp.eq.s32.totalorder %v39, %v431
    %vm455 = vcmp.eq.s32.totalorder %v40, %v431
    %vm456 = vcmp.eq.s32.totalorder %v37, %v451
    %vm457 = vcmp.eq.s32.totalorder %v38, %v451
    %vm458 = vcmp.eq.s32.totalorder %v39, %v451
    %vm459 = vcmp.eq.s32.totalorder %v40, %v451
    %v460 = vsel %vm452, -1e+30, %v376
    %v461 = vsel %vm453, -1e+30, %v377
    %v462 = vsel %vm454, -1e+30, %v378
    %v463 = vsel %vm455, -1e+30, %v379
    %v464 = vsel %vm456, -1e+30, %v380
    %v465 = vsel %vm457, -1e+30, %v381
    %v466 = vsel %vm458, -1e+30, %v382
    %v467 = vsel %vm459, -1e+30, %v383
    %v468 = vmax.f32 %v460, %v462
    %v469 = vmax.f32 %v461, %v463
    %v470 = vmax.f32 %v468, %v469
    %471 = vmax.xlane.f32.xlu0 %v470
    %v472 = vpop.xlane.xlu0 %471
    %v473 = vmax.f32 %v464, %v466
    %v474 = vmax.f32 %v465, %v467
    %v475 = vmax.f32 %v473, %v474
    %476 = vmax.xlane.f32.xlu0 %v475
    %v477 = vpop.xlane.xlu0 %476
    %v478 = vadd.f32 %v394, %v472
    %v479 = vadd.f32 %v395, %v477
    %v480 = vmul.f32 %v478, 0.2
    %v481 = vmul.f32 %v479, 0.2
    %v482 = vsub.f32 %v102, %v480
    %v483 = vsub.f32 %v103, %v481
    %v484 = vmul.f32 %v482, 0.5
    %v485 = vmul.f32 %v483, 0.5
    %v486 = vmul.f32 %v136, 0.5
    %v487 = vmul.f32 %v137, 0.5
    %v488 = vadd.f32 %v484, %v486
    %v489 = vadd.f32 %v485, %v487
    %v490 = vmul.f32 %v136, %v198
    %v491 = vmul.f32 %v137, %v199
    %v492 = vmul.f32 %v490, %v52
    %v493 = vmul.f32 %v491, %v53
    %vm494 = vcmask 7168
    %v495 = vsel %vm494, %v492, 0.0
    %v496 = vsel %vm494, %v493, 0.0
    %v497 = vadd.f32 %v495, %v496
    %498 = vadd.xlane.f32.xlu0 %v497
    %v499 = vpop.xlane.xlu0 %498
    %v500 = vrot.slane %v499, 4
    %v501 = vadd.f32 %v499, %v500
    %v502 = vrot.slane %v501, 2
    %v503 = vadd.f32 %v501, %v502
    %v504 = vrot.slane %v503, 1
    %v505 = vadd.f32 %v503, %v504
    %s506 = vtos %v505
    %v507 = vsub.f32 1.0, %v198
    %v508 = vsub.f32 1.0, %v199
    %v509 = vmul.f32 %v488, %v507
    %v510 = vmul.f32 %v489, %v508
    %v511 = vmul.f32 %v509, %v52
    %v512 = vmul.f32 %v510, %v53
    %v513 = vsel %vm494, %v511, 0.0
    %v514 = vsel %vm494, %v512, 0.0
    %v515 = vadd.f32 %v513, %v514
    %516 = vadd.xlane.f32.xlu0 %v515
    %v517 = vpop.xlane.xlu0 %516
    %v518 = vrot.slane %v517, 4
    %v519 = vadd.f32 %v517, %v518
    %v520 = vrot.slane %v519, 2
    %v521 = vadd.f32 %v519, %v520
    %v522 = vrot.slane %v521, 1
    %v523 = vadd.f32 %v521, %v522
    %s524 = vtos %v523
    %v525 = vmul.f32 %v198, %v52
    %v526 = vmul.f32 %v199, %v53
    %v527 = vsel %vm494, %v525, 0.0
    %v528 = vsel %vm494, %v526, 0.0
    %v529 = vadd.f32 %v527, %v528
    %530 = vadd.xlane.f32.xlu0 %v529
    %v531 = vpop.xlane.xlu0 %530
    %v532 = vrot.slane %v531, 4
    %v533 = vadd.f32 %v531, %v532
    %v534 = vrot.slane %v533, 2
    %v535 = vadd.f32 %v533, %v534
    %v536 = vrot.slane %v535, 1
    %v537 = vadd.f32 %v535, %v536
    %s538 = vtos %v537
    %vm539 = vcmp.eq.s32.totalorder %v43, 0
    %vm540 = vcmp.eq.s32.totalorder %v37, 0
    %vm541 = vmand %vm539, %vm540
    %v542 = vstv %s506
    %v543 = vsel %vm541, %v542, 0.0
    %vm544 = vcmp.eq.s32.totalorder %v37, 1
    %vm545 = vmand %vm539, %vm544
    %v546 = vstv %s524
    %v547 = vsel %vm545, %v546, 0.0
    %v548 = vadd.f32 %v543, %v547
    %vm549 = vcmp.eq.s32.totalorder %v37, 2
    %vm550 = vmand %vm539, %vm549
    %v551 = vstv %s538
    %v552 = vsel %vm550, %v551, 0.0
    %v553 = vadd.f32 %v548, %v552
    %554 = vst [vmem:[#allocation5] sm:$0xff] %v553
    // Predicated region
    $region14: #{tpu_custom_call.1} parent=1 // pred_check
      _
    $region15: #{tpu_custom_call.1} parent=1 // pred_check_branch
      %556 = sbr.rel (0) target = $region17
    $region16: #{tpu_custom_call.1} parent=1 // pred_region
      %s558 = ssub.s32 128, 128
      %559 = vsyncadd [#allocation4], %s558
      %s561 = sshll.u32 [#allocation5], 4
      %s562 = int_to_ptr.vmem [resolvable:$true] %s561
      %564 = dma.vmem_to_hbm [thread:$0]  %s562, 128, %s2, [#allocation4]
    $region17: #{tpu_custom_call.1} parent=1 // pred_fallthru
      _
    // Predicated region
    $region18: #{tpu_custom_call.1} parent=1 // pred_check
      _
    $region19: #{tpu_custom_call.1} parent=1 // pred_check_branch
      %566 = sbr.rel (0) target = $region21
    $region20: #{tpu_custom_call.1} parent=1 // pred_region
      %567 = dma.done [#allocation4], 128
    $region21: #{tpu_custom_call.1} parent=1 // pred_fallthru
      _
    %568 = vsyncpa [#allocation3], 1
    %569 = vsyncpa [#allocation4], 1

</llo_original>
